<compile_context>
chip_gen: v6e
topology: v6e:2x2x1
jax: 0.10.0
libtpu: 0.0.40
codegen_flags: <defaults>
</compile_context>

<pallas_src>
import math

import jax
import jax.numpy as jnp
from jax import lax
from jax.experimental import pallas as pl
from jax.experimental.pallas import tpu as pltpu

_GELU_C = math.sqrt(2.0 / math.pi)


def ffn_kernel(x_ref, w_ref, b_ref, o_ref):
    """One (tm, tn) output tile: h = x @ W.T + b ; o = tanh-GELU(h).

    x_ref: (tm, d_model)  compute dtype (bf16)
    w_ref: (tn, d_model)  compute dtype (bf16), PyTorch nn.Linear layout
    b_ref: (1, tn)        float32
    o_ref: (tm, tn)       output dtype
    """
    h = lax.dot_general(
        x_ref[...], w_ref[...],
        dimension_numbers=(((1,), (1,)), ((), ())),   # contract d_model of both
        preferred_element_type=jnp.float32)           # f32 MXU accumulation
    h = h + b_ref[...]                                # (tm, tn) + (1, tn)
    g = 0.5 * h * (1.0 + jnp.tanh(_GELU_C * (h + 0.044715 * (h * h * h))))
    o_ref[...] = g.astype(o_ref.dtype)


def _round_up(x: int, m: int) -> int:
    return (x + m - 1) // m * m


def positionwise_ff0_forward(x: jax.Array, w1: jax.Array, b1: jax.Array,
                             *, tm: int = 256, tn: int = 512,
                             compute_dtype=jnp.bfloat16,
                             vmem_budget_bytes: int = 40 << 20) -> jax.Array:
    """Equivalent of PositionwiseFeedForward0(d_model, d_ff).eval()(x).

    x : (batch, seq, d_model)
    w1: (d_ff, d_model)   (PyTorch nn.Linear weight layout, consumed as-is)
    b1: (d_ff,)
    returns (batch, seq, d_ff) in x.dtype
    """
    B, S, d_model = x.shape
    d_ff = w1.shape[0]
    assert w1.shape == (d_ff, d_model)
    assert b1.shape == (d_ff,)

    M = B * S
    csz = jnp.dtype(compute_dtype).itemsize
    osz = jnp.dtype(x.dtype).itemsize

    # Tile selection: sublane-aligned tm, lane-dense tn; never exceed the
    # (rounded-up) problem size.
    tm = min(tm, _round_up(M, 8))
    tn = min(tn, _round_up(d_ff, 128))

    def vmem_est(tm_, tn_):
        # double-buffered x tile + W tile + bias tile + output tile
        return (2 * tm_ * d_model * csz + 2 * tn_ * d_model * csz
                + 2 * tn_ * 4 + 2 * tm_ * tn_ * osz)

    # Shrink tiles (keeping alignment) until the double-buffered working set
    # fits the budget -- keeps the kernel portable to v7x's 64 MiB VMEM.
    while vmem_est(tm, tn) > vmem_budget_bytes:
        if tn > 128:
            tn = _round_up(tn // 2, 128)
        elif tm > 8:
            tm = _round_up(tm // 2, 8)
        else:
            break  # pathological d_model; accept and rely on vmem_limit below

    Mp = _round_up(M, tm)
    Np = _round_up(d_ff, tn)

    # Prepare operands: bf16 MXU inputs, f32 bias, zero-padding to tile multiples.
    x2 = x.reshape(M, d_model).astype(compute_dtype)
    w = w1.astype(compute_dtype)                       # (d_ff, d_model), no transpose
    b = b1.astype(jnp.float32).reshape(1, d_ff)
    if Mp != M:
        x2 = jnp.pad(x2, ((0, Mp - M), (0, 0)))
    if Np != d_ff:
        w = jnp.pad(w, ((0, Np - d_ff), (0, 0)))
        b = jnp.pad(b, ((0, 0), (0, Np - d_ff)))

    est = vmem_est(tm, tn)
    vmem_limit = int(min(max(2 * est, 32 << 20), 56 << 20))
    vmem_limit = max(vmem_limit, est + (8 << 20))

    out = pl.pallas_call(
        ffn_kernel,
        out_shape=jax.ShapeDtypeStruct((Mp, Np), x.dtype),
        grid_spec=pltpu.PrefetchScalarGridSpec(
            num_scalar_prefetch=0,
            grid=(Mp // tm, Np // tn),      # i outer, j (d_ff) inner
            in_specs=[
                # x tile ignores j -> stays resident in VMEM across the d_ff sweep
                pl.BlockSpec((tm, d_model), lambda i, j: (i, 0)),
                # weight panel in PyTorch (d_ff, d_model) layout
                pl.BlockSpec((tn, d_model), lambda i, j: (j, 0)),
                # bias slice
                pl.BlockSpec((1, tn), lambda i, j: (0, j)),
            ],
            out_specs=pl.BlockSpec((tm, tn), lambda i, j: (i, j)),
        ),
        compiler_params=pltpu.CompilerParams(
            dimension_semantics=("parallel", "parallel"),
            vmem_limit_bytes=vmem_limit),
    )(x2, w, b)

    # TODO(synk): training-mode nn.Dropout (p=0.1) is identity here (eval());
    # it could be fused into the kernel with pltpu.prng_seed/prng_random_bits.
    return out[:M, :d_ff].reshape(B, S, d_ff)


def _reference(x, w1, b1):
    """Pure-JAX reference of the PyTorch forward (eval mode)."""
    h = jnp.einsum('bsd,fd->bsf', x, w1) + b1
    return 0.5 * h * (1.0 + jnp.tanh(_GELU_C * (h + 0.044715 * jnp.power(h, 3))))


if __name__ == "__main__":
    key = jax.random.PRNGKey(0)
    batch, seq, d_model, d_ff = 2, 8, 32, 64

    kx, kw, kb = jax.random.split(key, 3)
    x = jax.random.normal(kx, (batch, seq, d_model), dtype=jnp.float32)
    bound = 1.0 / math.sqrt(d_model)        # PyTorch nn.Linear default init scale
    w1 = jax.random.uniform(kw, (d_ff, d_model), jnp.float32, -bound, bound)
    b1 = jax.random.uniform(kb, (d_ff,), jnp.float32, -bound, bound)

    out = positionwise_ff0_forward(x, w1, b1)
    out = jax.block_until_ready(out)

    assert out.shape == (batch, seq, d_ff), out.shape
    assert out.dtype == jnp.float32

    # Tight check against a reference that uses the same bf16-rounded operands
    # (isolates kernel correctness from the deliberate bf16 MXU cast).
    ref_bf16 = _reference(x.astype(jnp.bfloat16).astype(jnp.float32),
                          w1.astype(jnp.bfloat16).astype(jnp.float32), b1)
    err_k = jnp.max(jnp.abs(out - ref_bf16))
    assert jnp.allclose(out, ref_bf16, atol=2e-3, rtol=2e-3), \
        f"kernel mismatch vs bf16-operand reference: max abs err {err_k}"

    # Looser check against the full-f32 PyTorch-equivalent reference
    # (bounds the precision cost of the bf16 MXU operands).
    ref_f32 = _reference(x, w1, b1)
    err_s = jnp.max(jnp.abs(out - ref_f32))
    assert jnp.allclose(out, ref_f32, atol=3e-2, rtol=3e-2), \
        f"semantic drift vs f32 reference too large: max abs err {err_s}"

    print("KERNEL_OK")
</pallas_src>

<mosaic_0001>
module attributes {stable_mosaic.version = 11 : i64} {
  func.func @ffn_kernel(%arg0: i32, %arg1: i32, %arg2: memref<16x32xbf16, #tpu.memory_space<vmem>>, %arg3: memref<128x32xbf16, #tpu.memory_space<vmem>>, %arg4: memref<1x128xf32, #tpu.memory_space<vmem>>, %arg5: memref<16x128xf32, #tpu.memory_space<vmem>>) attributes {dimension_semantics = [#tpu.dimension_semantics<parallel>, #tpu.dimension_semantics<parallel>], iteration_bounds = array<i64: 1, 1>, scalar_prefetch = 0 : i64, scratch_operands = 0 : i64, tpu.core_type = #tpu.core_type<tc>, window_params = [{transform_indices = @transform_0, window_bounds = array<i64: 16, 32>}, {transform_indices = @transform_1, window_bounds = array<i64: 128, 32>}, {transform_indices = @transform_2, window_bounds = array<i64: 1, 128>}, {transform_indices = @transform_3, window_bounds = array<i64: 16, 128>}]} {
    %c0 = arith.constant 0 : index
    %c0_0 = arith.constant 0 : index
    %0 = vector.load %arg2[%c0, %c0_0] : memref<16x32xbf16, #tpu.memory_space<vmem>>, vector<16x32xbf16>
    %c0_1 = arith.constant 0 : index
    %c0_2 = arith.constant 0 : index
    %1 = vector.load %arg3[%c0_1, %c0_2] : memref<128x32xbf16, #tpu.memory_space<vmem>>, vector<128x32xbf16>
    %cst = arith.constant dense<0.000000e+00> : vector<16x128xf32>
    %2 = tpu.matmul %0, %1, %cst {dimension_numbers = #tpu.dot_dimension_numbers<[1], [1], [0], [0], [0, 0, 1, 0], [], []>} : vector<16x32xbf16>, vector<128x32xbf16>, vector<16x128xf32> -> vector<16x128xf32>
    %c0_3 = arith.constant 0 : index
    %c0_4 = arith.constant 0 : index
    %3 = vector.load %arg4[%c0_3, %c0_4] : memref<1x128xf32, #tpu.memory_space<vmem>>, vector<1x128xf32>
    %4 = vector.broadcast %3 : vector<1x128xf32> to vector<16x128xf32>
    %5 = arith.addf %2, %4 : vector<16x128xf32>
    %cst_5 = arith.constant 5.000000e-01 : f32
    %6 = vector.broadcast %cst_5 : f32 to vector<16x128xf32>
    %7 = arith.mulf %6, %5 : vector<16x128xf32>
    %8 = arith.mulf %5, %5 : vector<16x128xf32>
    %9 = arith.mulf %8, %5 : vector<16x128xf32>
    %cst_6 = arith.constant 4.471500e-02 : f32
    %10 = vector.broadcast %cst_6 : f32 to vector<16x128xf32>
    %11 = arith.mulf %10, %9 : vector<16x128xf32>
    %12 = arith.addf %5, %11 : vector<16x128xf32>
    %cst_7 = arith.constant 0.797884583 : f32
    %13 = vector.broadcast %cst_7 : f32 to vector<16x128xf32>
    %14 = arith.mulf %13, %12 : vector<16x128xf32>
    %15 = math.tanh %14 : vector<16x128xf32>
    %cst_8 = arith.constant 1.000000e+00 : f32
    %16 = vector.broadcast %cst_8 : f32 to vector<16x128xf32>
    %17 = arith.addf %16, %15 : vector<16x128xf32>
    %18 = arith.mulf %7, %17 : vector<16x128xf32>
    %c0_9 = arith.constant 0 : index
    %c0_10 = arith.constant 0 : index
    %19 = vector.load %arg5[%c0_9, %c0_10] : memref<16x128xf32, #tpu.memory_space<vmem>>, vector<16x128xf32>
    tpu.vector_store %arg5[%c0_9, %c0_10], %18 {strides = array<i32>} : memref<16x128xf32, #tpu.memory_space<vmem>>, vector<16x128xf32>,
    return
  }
  func.func @transform_0(%arg0: i32, %arg1: i32) -> (i32, i32) {
    %c0_i32 = arith.constant 0 : i32
    %c0_i32_0 = arith.constant 0 : i32
    return %arg0, %c0_i32 : i32, i32
  }
  func.func @transform_1(%arg0: i32, %arg1: i32) -> (i32, i32) {
    %c0_i32 = arith.constant 0 : i32
    %c0_i32_0 = arith.constant 0 : i32
    return %arg1, %c0_i32 : i32, i32
  }
  func.func @transform_2(%arg0: i32, %arg1: i32) -> (i32, i32) {
    %c0_i32 = arith.constant 0 : i32
    %c0_i32_0 = arith.constant 0 : i32
    return %c0_i32, %arg1 : i32, i32
  }
  func.func @transform_3(%arg0: i32, %arg1: i32) -> (i32, i32) {
    %c0_i32 = arith.constant 0 : i32
    return %arg0, %arg1 : i32, i32
  }
}

</mosaic_0001>

<llo_original>
// kernel: tpu_custom_call.1
$region0: #{tpu_custom_call.1}
  #allocation0 [shape = 'u32[]', space=smem, size = 0x4, offset = 0x4, fixed_abs, tag = 'smem constant byte address 0x4 - core index']
  #allocation1 [shape = 'u32[144,128]{1,0:T(1,128)}', space=vmem, size = 0x12000, scoped, tag = 'internal scratch']
  %s0 = inlined_call_operand.vmem [shape: bf16[16,32], index: 0, kind: input, shape index: {}]
  %s1 = inlined_call_operand.vmem [shape: bf16[128,32], index: 1, kind: input, shape index: {}]
  %s2 = inlined_call_operand.vmem [shape: f32[1,128], index: 2, kind: input, shape index: {}]
  %s3 = inlined_call_operand.hbm [shape: f32[16,128], index: 3, kind: output, shape index: {}]
  %s4 = sld [smem:[#allocation0]]
  $region22: #{tpu_custom_call.1} parent=0
    _
  %s6 = ssub.s32 1, %s4
  %s7 = scalar_select 0, %s6, %s4
  $region1: #{tpu_custom_call.1} parent=0
    #allocation2 [shape = 'u8[8192]{0}', space=vmem, size = 0x2000, scoped, tag = 'output window, operand 0, single buffered']
    #allocation3 [shape = 's32[1]{0}', space=sflag, size = 0x4, scoped, tag = 'scoped memory for tpu_custom_call.1']
    %8 = vsyncpa [#allocation3], 0
    // Predicated region
    $region2: #{tpu_custom_call.1} parent=1 // pred_check
      _
    $region3: #{tpu_custom_call.1} parent=1 // pred_check_branch
      %10 = sbr.rel (0) target = $region5
    $region4: #{tpu_custom_call.1} parent=1 // pred_region
      _
    $region5: #{tpu_custom_call.1} parent=1 // pred_fallthru
      _
    // Predicated region
    $region6: #{tpu_custom_call.1} parent=1 // pred_check
      _
    $region7: #{tpu_custom_call.1} parent=1 // pred_check_branch
      %12 = sbr.rel (0) target = $region9
    $region8: #{tpu_custom_call.1} parent=1 // pred_region
      _
    $region9: #{tpu_custom_call.1} parent=1 // pred_fallthru
      _
    // Predicated region
    $region10: #{tpu_custom_call.1} parent=1 // pred_check
      _
    $region11: #{tpu_custom_call.1} parent=1 // pred_check_branch
      %14 = sbr.rel (0) target = $region13
    $region12: #{tpu_custom_call.1} parent=1 // pred_region
      _
    $region13: #{tpu_custom_call.1} parent=1 // pred_fallthru
      _
    %v16 = vld [vmem:[%s0] sm:$0xf]
    %v17 = vld [vmem:[%s0 + $0x4] sm:$0xf]
    %v18 = vld [vmem:[%s1] sm:$0xf]
    %v19 = vld [vmem:[%s1 + $0x4] sm:$0xf]
    %v20 = vld [vmem:[%s1 + $0x8] sm:$0xf]
    %v21 = vld [vmem:[%s1 + $0xc] sm:$0xf]
    %v22 = vld [vmem:[%s1 + $0x10] sm:$0xf]
    %v23 = vld [vmem:[%s1 + $0x14] sm:$0xf]
    %v24 = vld [vmem:[%s1 + $0x18] sm:$0xf]
    %v25 = vld [vmem:[%s1 + $0x1c] sm:$0xf]
    %v26 = vld [vmem:[%s1 + $0x20] sm:$0xf]
    %v27 = vld [vmem:[%s1 + $0x24] sm:$0xf]
    %v28 = vld [vmem:[%s1 + $0x28] sm:$0xf]
    %v29 = vld [vmem:[%s1 + $0x2c] sm:$0xf]
    %v30 = vld [vmem:[%s1 + $0x30] sm:$0xf]
    %v31 = vld [vmem:[%s1 + $0x34] sm:$0xf]
    %v32 = vld [vmem:[%s1 + $0x38] sm:$0xf]
    %v33 = vld [vmem:[%s1 + $0x3c] sm:$0xf]
    %v34 = vld [vmem:[%s2] sm:$0x1]
    %v36 = vlaneseq
    %v37 = vshrl.u32 %v36, 7
    %v38 = vsub.s32 0, %v37
    %v39 = vrot.slane %v34, %v38
    %v43 = vunpack.c.l.b16 %v16
    %v44 = vunpack.c.l.b16 %v17
    %v45 = vpack.c.b16 %v44, %v43
    %v62 = vunpack.c.l.b16 %v18
    %v63 = vunpack.c.l.b16 %v19
    %v64 = vunpack.c.l.b16 %v20
    %v65 = vunpack.c.l.b16 %v21
    %v66 = vunpack.c.l.b16 %v22
    %v67 = vunpack.c.l.b16 %v23
    %v68 = vunpack.c.l.b16 %v24
    %v69 = vunpack.c.l.b16 %v25
    %v70 = vunpack.c.l.b16 %v26
    %v71 = vunpack.c.l.b16 %v27
    %v72 = vunpack.c.l.b16 %v28
    %v73 = vunpack.c.l.b16 %v29
    %v74 = vunpack.c.l.b16 %v30
    %v75 = vunpack.c.l.b16 %v31
    %v76 = vunpack.c.l.b16 %v32
    %v77 = vunpack.c.l.b16 %v33
    %v78 = vpack.c.b16 %v63, %v62
    %v79 = vpack.c.b16 %v65, %v64
    %v80 = vpack.c.b16 %v67, %v66
    %v81 = vpack.c.b16 %v69, %v68
    %v82 = vpack.c.b16 %v71, %v70
    %v83 = vpack.c.b16 %v73, %v72
    %v84 = vpack.c.b16 %v75, %v74
    %v85 = vpack.c.b16 %v77, %v76
    %vm86 = vcmask 261120
    %v88 = vsel %vm86, %v45, 0
    %v91 = vsel %vm86, %v78, 0
    %v94 = vsel %vm86, %v79, 0
    %v97 = vsel %vm86, %v80, 0
    %v100 = vsel %vm86, %v81, 0
    %v103 = vsel %vm86, %v82, 0
    %v106 = vsel %vm86, %v83, 0
    %v109 = vsel %vm86, %v84, 0
    %v112 = vsel %vm86, %v85, 0
    %114 = vmatprep.subr.bf16.mxu0 0
    %115 = vmatpush1.bf16.xpose.msra.mxu0 %v112
    %116 = vmatprep.subr.bf16.mxu0 0
    %117 = vmatpush1.bf16.xpose.msra.mxu0 %v109
    %118 = vmatprep.subr.bf16.mxu0 0
    %119 = vmatpush1.bf16.xpose.msra.mxu0 %v106
    %120 = vmatprep.subr.bf16.mxu0 0
    %121 = vmatpush1.bf16.xpose.msra.mxu0 %v103
    %122 = vmatprep.subr.bf16.mxu0 0
    %123 = vmatpush1.bf16.xpose.msra.mxu0 %v100
    %124 = vmatprep.subr.bf16.mxu0 0
    %125 = vmatpush1.bf16.xpose.msra.mxu0 %v97
    %126 = vmatprep.subr.bf16.mxu0 0
    %127 = vmatpush1.bf16.xpose.msra.mxu0 %v94
    %128 = vmatprep.subr.bf16.mxu0 0
    %129 = vmatpush1.bf16.xpose.msra.mxu0 %v91
    %130 = vmatprep.subr.bf16.mxu0 0
    %131 = vmatpush2.bf16.xpose.msra.mxu0 0
    %132 = vmatprep.subr.bf16.mxu0 0
    %133 = vmatpush2.bf16.xpose.msra.mxu0 0
    %134 = vmatprep.subr.bf16.mxu0 0
    %135 = vmatpush2.bf16.xpose.msra.mxu0 0
    %136 = vmatprep.subr.bf16.mxu0 0
    %137 = vmatpush2.bf16.xpose.msra.mxu0 0
    %138 = vmatprep.subr.bf16.mxu0 0
    %139 = vmatpush2.bf16.xpose.msra.mxu0 0
    %140 = vmatprep.subr.bf16.mxu0 0
    %141 = vmatpush2.bf16.xpose.msra.mxu0 0
    %142 = vmatprep.subr.bf16.mxu0 0
    %143 = vmatpush2.bf16.xpose.msra.mxu0 0
    %144 = vmatprep.subr.bf16.mxu0 0
    %145 = vmatpush2.bf16.xpose.msra.mxu0 0
    %146 = vmatprep.mubr.bf16.mxu0 0
    %147 = vmatmul.mubr.bf16.gmra.mxu0 %v88
    %v148 = vpop.f32.mrf.mxu0
    %v149 = vadd.f32 %v39, %v148
    %v150 = vpop.f32.mrf.mxu0
    %v151 = vpop.f32.mrf.mxu0
    %v152 = vadd.f32 %v39, %v151
    %v153 = vpop.f32.mrf.mxu0
    %154 = vdwg.mxu0
    %v155 = vmul.f32 %v149, 0.5
    %v156 = vmul.f32 %v152, 0.5
    %v157 = vmul.f32 %v149, %v149
    %v158 = vmul.f32 %v152, %v152
    %v159 = vmul.f32 %v157, %v149
    %v160 = vmul.f32 %v158, %v152
    %v161 = vmul.f32 %v159, 0.044715
    %v162 = vmul.f32 %v160, 0.044715
    %v163 = vadd.f32 %v149, %v161
    %v164 = vadd.f32 %v152, %v162
    %v165 = vmul.f32 %v163, 0.7978846
    %v166 = vmul.f32 %v164, 0.7978846
    %v167 = vtanh.pop %v165
    %v168 = vtanh.pop %v166
    %v169 = vadd.f32 %v167, 1.0
    %v170 = vadd.f32 %v168, 1.0
    %v171 = vmul.f32 %v155, %v169
    %v172 = vmul.f32 %v156, %v170
    %173 = vst [vmem:[#allocation2] sm:$0xff] %v171
    %174 = vst [vmem:[#allocation2 + $0x8] sm:$0xff] %v172
    // Predicated region
    $region14: #{tpu_custom_call.1} parent=1 // pred_check
      _
    $region15: #{tpu_custom_call.1} parent=1 // pred_check_branch
      %176 = sbr.rel (0) target = $region17
    $region16: #{tpu_custom_call.1} parent=1 // pred_region
      %s178 = ssub.s32 256, 256
      %179 = vsyncadd [#allocation3], %s178
      %s180 = sshll.u32 [#allocation2], 4
      %s181 = int_to_ptr.vmem [resolvable:$true] %s180
      %186 = dma.vmem_to_hbm [thread:$0]  %s181, 256, %s3, [#allocation3], 128, 128, 8
    $region17: #{tpu_custom_call.1} parent=1 // pred_fallthru
      _
    // Predicated region
    $region18: #{tpu_custom_call.1} parent=1 // pred_check
      _
    $region19: #{tpu_custom_call.1} parent=1 // pred_check_branch
      %188 = sbr.rel (0) target = $region21
    $region20: #{tpu_custom_call.1} parent=1 // pred_region
      %189 = dma.done [#allocation3], 256
    $region21: #{tpu_custom_call.1} parent=1 // pred_fallthru
      _
    %190 = vsyncpa [#allocation3], 1

</llo_original>
